<compile_context>
chip_gen: v7x
topology: tpu7x:2x2x1
jax: 0.10.0
libtpu: 0.0.40
codegen_flags: <defaults>
</compile_context>

<pallas_src>
import math
import jax
import jax.numpy as jnp
from jax.experimental import pallas as pl
from jax.experimental.pallas import tpu as pltpu

_EPS = 1e-5
_VMEM_LIMIT = 32 * 1024 * 1024   # sized for v7x's 64 MiB per-TC VMEM
_TM = 256                        # M-tile (rows); multiple of 8, modest for v7x


def _round_up(x, m):
    return (x + m - 1) // m * m


def _choose_tile(m):
    """Pick an M tile (multiple of 8) and padded M that the tile divides."""
    mp = _round_up(max(m, 1), 8)
    if mp <= _TM:
        return mp, mp
    return _TM, _round_up(m, _TM)


# ----------------------------- Pallas kernels ------------------------------

def _gemm_stats_kernel(p_ref, w_ref, y_ref, s_ref, q_ref):
    """bf16 im2col-GEMM tile (f32 accumulate) + per-channel sum / sum-of-sq
    accumulated across the M grid axis (resident accumulator outputs)."""
    @pl.when(pl.program_id(0) == 0)
    def _init():
        s_ref[...] = jnp.zeros_like(s_ref)
        q_ref[...] = jnp.zeros_like(q_ref)

    y = jnp.dot(p_ref[...], w_ref[...], preferred_element_type=jnp.float32)
    y_ref[...] = y
    s_ref[...] += jnp.sum(y, axis=0, keepdims=True)
    q_ref[...] += jnp.sum(y * y, axis=0, keepdims=True)


def _make_apply_kernel(relu: bool, res_mode: str):
    """Elementwise BN-apply: out = [relu](y*scale + shift [+ residual])."""

    def kernel(*refs):
        if res_mode == "raw":      # residual is a raw conv output + its BN fold
            y_ref, s_ref, b_ref, r_ref, rs_ref, rb_ref, o_ref = refs
        elif res_mode == "plain":  # residual is an already-normalized activation
            y_ref, s_ref, b_ref, r_ref, o_ref = refs
        else:
            y_ref, s_ref, b_ref, o_ref = refs
        y = y_ref[...] * s_ref[...] + b_ref[...]
        if res_mode == "raw":
            y = y + (r_ref[...] * rs_ref[...] + rb_ref[...])
        elif res_mode == "plain":
            y = y + r_ref[...]
        if relu:
            y = jnp.maximum(y, 0.0)
        o_ref[...] = y.astype(o_ref.dtype)

    return kernel


def _maxpool_kernel(p_ref, o_ref):
    """Window max over taps-leading patches: p_ref [k*k, tm, C] -> [tm, C]."""
    acc = p_ref[0]
    for j in range(1, p_ref.shape[0]):
        acc = jnp.maximum(acc, p_ref[j])
    o_ref[...] = acc


# ------------------------------ JAX glue -----------------------------------

def _shifted_views(x_nhwc, k, stride, pad, pad_value):
    """k*k strided shifted views of the (spatially padded) input."""
    N, H, W, C = x_nhwc.shape
    xp = jnp.pad(x_nhwc, ((0, 0), (pad, pad), (pad, pad), (0, 0)),
                 constant_values=pad_value)
    OH = (H + 2 * pad - k) // stride + 1
    OW = (W + 2 * pad - k) // stride + 1
    cols = []
    for dy in range(k):
        for dx in range(k):
            cols.append(xp[:, dy:dy + stride * (OH - 1) + 1:stride,
                           dx:dx + stride * (OW - 1) + 1:stride, :])
    return cols, OH, OW


def conv2d_raw(x_nhwc, conv):
    """conv2d(bias=False) as a tiled Pallas GEMM.

    Returns un-normalized output rows [Mp, OC] (f32) plus per-channel batch
    sum / sum-of-squares accumulated inside the kernel."""
    k, stride, pad = conv["k"], conv["stride"], conv["pad"]
    K, oc, wmat = conv["K"], conv["oc"], conv["w"]
    Kp = wmat.shape[0]

    N, H, W, C = x_nhwc.shape
    cols, OH, OW = _shifted_views(x_nhwc, k, stride, pad, 0.0)
    M = N * OH * OW
    # TODO(synk): build patches tile-by-tile inside the kernel (per-tap shifted
    # BlockSpec index_maps on the NHWC input) instead of materializing the full
    # im2col matrix in HBM; kept in XLA here for simplicity/robustness.
    patches = jnp.concatenate([c.reshape(M, -1) for c in cols], axis=-1)  # [M, K]
    tm, Mp = _choose_tile(M)
    patches = jnp.pad(patches, ((0, Mp - M), (0, Kp - K))).astype(jnp.bfloat16)

    grid = (Mp // tm,)
    bytes_accessed = (Mp * Kp * 2) + (Kp * oc * 2) + (Mp * oc * 4) + (2 * oc * 4)
    y, ssum, ssq = pl.pallas_call(
        _gemm_stats_kernel,
        out_shape=(jax.ShapeDtypeStruct((Mp, oc), jnp.float32),
                   jax.ShapeDtypeStruct((1, oc), jnp.float32),
                   jax.ShapeDtypeStruct((1, oc), jnp.float32)),
        grid=grid,
        in_specs=[pl.BlockSpec((tm, Kp), lambda m: (m, 0)),
                  pl.BlockSpec((Kp, oc), lambda m: (0, 0))],
        out_specs=(pl.BlockSpec((tm, oc), lambda m: (m, 0)),
                   pl.BlockSpec((1, oc), lambda m: (0, 0)),
                   pl.BlockSpec((1, oc), lambda m: (0, 0))),
        compiler_params=pltpu.CompilerParams(
            dimension_semantics=("arbitrary",),   # stats accumulator across M
            vmem_limit_bytes=_VMEM_LIMIT),
        cost_estimate=pl.CostEstimate(flops=2 * Mp * Kp * oc,
                                      transcendentals=0,
                                      bytes_accessed=bytes_accessed),
    )(patches, wmat)

    return {"y": y, "sum": ssum, "sq": ssq, "count": M, "tm": tm,
            "shape": (N, OH, OW, oc)}


def _fold_bn(ssum, ssq, count, bn):
    """Fold training-mode BatchNorm (biased batch stats) into scale/shift."""
    mean = ssum / float(count)
    var = jnp.maximum(ssq / float(count) - mean * mean, 0.0)
    scale = bn["g"] * jax.lax.rsqrt(var + _EPS)
    shift = bn["b"] - mean * scale
    return scale, shift


def bn_apply(cv, bn, relu, residual=None, res_bn=None):
    """Apply BatchNorm scale/shift (+ optional residual) + optional ReLU,
    tiled over M. `residual` is either an NHWC activation (identity path) or a
    raw conv2d_raw dict whose own BN is folded in here (downsample path)."""
    y, tm = cv["y"], cv["tm"]
    N, OH, OW, oc = cv["shape"]
    M = cv["count"]
    Mp = y.shape[0]
    scale, shift = _fold_bn(cv["sum"], cv["sq"], M, bn)

    args = [y, scale, shift]
    if residual is None:
        res_mode = "none"
    elif res_bn is not None:
        rs, rb = _fold_bn(residual["sum"], residual["sq"], residual["count"], res_bn)
        args += [residual["y"], rs, rb]
        res_mode = "raw"
    else:
        r = residual.reshape(M, oc)
        r = jnp.pad(r, ((0, Mp - M), (0, 0)))
        args += [r]
        res_mode = "plain"

    in_specs = []
    for a in args:
        if a.shape[0] == Mp:
            in_specs.append(pl.BlockSpec((tm, oc), lambda m: (m, 0)))
        else:
            in_specs.append(pl.BlockSpec((1, oc), lambda m: (0, 0)))

    out = pl.pallas_call(
        _make_apply_kernel(relu, res_mode),
        out_shape=jax.ShapeDtypeStruct((Mp, oc), jnp.float32),
        grid=(Mp // tm,),
        in_specs=in_specs,
        out_specs=pl.BlockSpec((tm, oc), lambda m: (m, 0)),
        compiler_params=pltpu.CompilerParams(
            dimension_semantics=("parallel",),
            vmem_limit_bytes=_VMEM_LIMIT),
    )(*args)
    return out[:M].reshape(N, OH, OW, oc)


def maxpool2d(x_nhwc, k=3, stride=2, pad=1):
    N, H, W, C = x_nhwc.shape
    cols, OH, OW = _shifted_views(x_nhwc, k, stride, pad, -jnp.inf)
    M = N * OH * OW
    # taps-leading layout [k*k, M, C]: no 9-on-sublane padding waste.
    p = jnp.stack([c.reshape(M, C) for c in cols], axis=0)
    tm, Mp = _choose_tile(M)
    p = jnp.pad(p, ((0, 0), (0, Mp - M), (0, 0)))

    out = pl.pallas_call(
        _maxpool_kernel,
        out_shape=jax.ShapeDtypeStruct((Mp, C), jnp.float32),
        grid=(Mp // tm,),
        in_specs=[pl.BlockSpec((k * k, tm, C), lambda m: (0, m, 0))],
        out_specs=pl.BlockSpec((tm, C), lambda m: (m, 0)),
        compiler_params=pltpu.CompilerParams(
            dimension_semantics=("parallel",),
            vmem_limit_bytes=_VMEM_LIMIT),
    )(p)
    return out[:M].reshape(N, OH, OW, C)


# --------------------------- parameter creation -----------------------------

def _make_conv(key, oc, ic, k, stride, pad):
    # PyTorch init: normal_(0, sqrt(2 / (k*k*out_channels)))
    std = math.sqrt(2.0 / (k * k * oc))
    w = jax.random.normal(key, (oc, ic, k, k), jnp.float32) * std
    K = k * k * ic
    # [OC, IC, KH, KW] -> [KH, KW, IC, OC] -> [K, OC], zero-pad K to 128-mult,
    # pre-cast to bf16 once (no per-forward transposes).
    wmat = jnp.transpose(w, (2, 3, 1, 0)).reshape(K, oc)
    Kp = _round_up(K, 128)
    wmat = jnp.pad(wmat, ((0, Kp - K), (0, 0))).astype(jnp.bfloat16)
    return {"w": wmat, "k": k, "stride": stride, "pad": pad, "K": K, "oc": oc}


def _make_bn(c):
    # PyTorch init: weight.fill_(1), bias.zero_()
    return {"g": jnp.ones((1, c), jnp.float32), "b": jnp.zeros((1, c), jnp.float32)}


def make_resnet_params(key, layers=(1, 1, 1, 1)):
    params = {}
    key, k0 = jax.random.split(key)
    params["conv1"] = _make_conv(k0, 64, 3, k=7, stride=2, pad=3)
    params["bn1"] = _make_bn(64)

    inplanes = 64
    for li, (planes, nblocks, stride) in enumerate(
            zip((64, 128, 256, 512), layers, (1, 2, 2, 2)), start=1):
        blocks = []
        for bi in range(nblocks):
            s = stride if bi == 0 else 1
            key, k1, k2, k3 = jax.random.split(key, 4)
            blk = {
                "conv1": _make_conv(k1, planes, inplanes, 3, s, 1),
                "bn1": _make_bn(planes),
                "conv2": _make_conv(k2, planes, planes, 3, 1, 1),
                "bn2": _make_bn(planes),
            }
            if s != 1 or inplanes != planes:   # BasicBlock expansion = 1
                blk["ds"] = _make_conv(k3, planes, inplanes, 1, s, 0)
                blk["dsbn"] = _make_bn(planes)
            blocks.append(blk)
            inplanes = planes
        params[f"layer{li}"] = blocks
    return params


# ------------------------------- forward ------------------------------------

def basic_block_forward(x_nhwc, blk):
    # out = relu(bn2(conv2(relu(bn1(conv1(x))))) + identity)
    cv1 = conv2d_raw(x_nhwc, blk["conv1"])
    h = bn_apply(cv1, blk["bn1"], relu=True)
    cv2 = conv2d_raw(h, blk["conv2"])
    if "ds" in blk:
        cvd = conv2d_raw(x_nhwc, blk["ds"])
        # downsample BN folded into conv2's apply pass (saves a launch)
        return bn_apply(cv2, blk["bn2"], relu=True, residual=cvd, res_bn=blk["dsbn"])
    return bn_apply(cv2, blk["bn2"], relu=True, residual=x_nhwc)


def resnet_forward(x_nchw, params):
    x = jnp.transpose(x_nchw, (0, 2, 3, 1)).astype(jnp.float32)  # NCHW -> NHWC
    cv = conv2d_raw(x, params["conv1"])
    x = bn_apply(cv, params["bn1"], relu=True)
    x = maxpool2d(x, k=3, stride=2, pad=1)

    feats = []
    for li in range(1, 5):
        for blk in params[f"layer{li}"]:
            x = basic_block_forward(x, blk)
        feats.append(x)

    out = jnp.transpose(x, (0, 3, 1, 2))              # back to NCHW
    f = [jnp.transpose(t, (0, 3, 1, 2)) for t in feats]
    return out, f


# -------------------------------- main ---------------------------------------

if __name__ == "__main__":
    key = jax.random.PRNGKey(0)
    key, pkey, xkey = jax.random.split(key, 3)
    params = make_resnet_params(pkey, layers=(1, 1, 1, 1))

    # Small input consistent with the module (conv1 expects 3 input channels).
    x = jax.random.normal(xkey, (2, 3, 32, 32), jnp.float32)

    out, feats = resnet_forward(x, params)
    jax.block_until_ready(out)
    for t in feats:
        jax.block_until_ready(t)

    # Shape sanity checks (BasicBlock, 32x32 input):
    assert out.shape == (2, 512, 1, 1)
    assert feats[0].shape == (2, 64, 8, 8)
    assert feats[1].shape == (2, 128, 4, 4)
    assert feats[2].shape == (2, 256, 2, 2)
    assert feats[3].shape == (2, 512, 1, 1)
    assert all(bool(jnp.isfinite(t).all()) for t in [out] + feats)

    print("KERNEL_OK")
</pallas_src>

<mosaic_0001>
module attributes {stable_mosaic.version = 11 : i64} {
  func.func @_gemm_stats_kernel(%arg0: i32, %arg1: memref<256x256xbf16, #tpu.memory_space<vmem>>, %arg2: memref<256x64xbf16, #tpu.memory_space<vmem>>, %arg3: memref<256x64xf32, #tpu.memory_space<vmem>>, %arg4: memref<1x64xf32, #tpu.memory_space<vmem>>, %arg5: memref<1x64xf32, #tpu.memory_space<vmem>>) attributes {dimension_semantics = [#tpu.dimension_semantics<arbitrary>], iteration_bounds = array<i64: 2>, scalar_prefetch = 0 : i64, scratch_operands = 0 : i64, tpu.core_type = #tpu.core_type<tc>, window_params = [{transform_indices = @transform_0, window_bounds = array<i64: 256, 256>}, {pipeline_mode = #tpu.pipeline_mode<synchronous>, transform_indices = @transform_1, window_bounds = array<i64: 256, 64>}, {transform_indices = @transform_2, window_bounds = array<i64: 256, 64>}, {pipeline_mode = #tpu.pipeline_mode<synchronous>, transform_indices = @transform_3, window_bounds = array<i64: 1, 64>}, {pipeline_mode = #tpu.pipeline_mode<synchronous>, transform_indices = @transform_4, window_bounds = array<i64: 1, 64>}]} {
    %c0_i32 = arith.constant 0 : i32
    %0 = arith.cmpi eq, %arg0, %c0_i32 : i32
    %1 = arith.extui %0 : i1 to i32
    %c0_i32_0 = arith.constant 0 : i32
    %2 = arith.cmpi ne, %1, %c0_i32_0 : i32
    scf.if %2 {
      %cst_16 = arith.constant 0.000000e+00 : f32
      %18 = vector.broadcast %cst_16 : f32 to vector<1x64xf32>
      %c0_17 = arith.constant 0 : index
      %c0_18 = arith.constant 0 : index
      %19 = vector.load %arg4[%c0_17, %c0_18] : memref<1x64xf32, #tpu.memory_space<vmem>>, vector<1x64xf32>
      tpu.vector_store %arg4[%c0_17, %c0_18], %18 {strides = array<i32>} : memref<1x64xf32, #tpu.memory_space<vmem>>, vector<1x64xf32>,
      %cst_19 = arith.constant 0.000000e+00 : f32
      %20 = vector.broadcast %cst_19 : f32 to vector<1x64xf32>
      %c0_20 = arith.constant 0 : index
      %c0_21 = arith.constant 0 : index
      %21 = vector.load %arg5[%c0_20, %c0_21] : memref<1x64xf32, #tpu.memory_space<vmem>>, vector<1x64xf32>
      tpu.vector_store %arg5[%c0_20, %c0_21], %20 {strides = array<i32>} : memref<1x64xf32, #tpu.memory_space<vmem>>, vector<1x64xf32>,
    } else {
    }
    %c0 = arith.constant 0 : index
    %c0_1 = arith.constant 0 : index
    %3 = vector.load %arg1[%c0, %c0_1] : memref<256x256xbf16, #tpu.memory_space<vmem>>, vector<256x256xbf16>
    %c0_2 = arith.constant 0 : index
    %c0_3 = arith.constant 0 : index
    %4 = vector.load %arg2[%c0_2, %c0_3] : memref<256x64xbf16, #tpu.memory_space<vmem>>, vector<256x64xbf16>
    %cst = arith.constant dense<0.000000e+00> : vector<256x64xf32>
    %5 = tpu.matmul %3, %4, %cst {dimension_numbers = #tpu.dot_dimension_numbers<[1], [0], [0], [1], [0, 0, 1, 1], [], []>} : vector<256x256xbf16>, vector<256x64xbf16>, vector<256x64xf32> -> vector<256x64xf32>
    %c0_4 = arith.constant 0 : index
    %c0_5 = arith.constant 0 : index
    %6 = vector.load %arg3[%c0_4, %c0_5] : memref<256x64xf32, #tpu.memory_space<vmem>>, vector<256x64xf32>
    tpu.vector_store %arg3[%c0_4, %c0_5], %5 {strides = array<i32>} : memref<256x64xf32, #tpu.memory_space<vmem>>, vector<256x64xf32>,
    %c0_6 = arith.constant 0 : index
    %c0_7 = arith.constant 0 : index
    %7 = vector.load %arg4[%c0_6, %c0_7] : memref<1x64xf32, #tpu.memory_space<vmem>>, vector<1x64xf32>
    %cst_8 = arith.constant dense<0.000000e+00> : vector<64xf32>
    %8 = vector.multi_reduction <add>, %5, %cst_8 [0] : vector<256x64xf32> to vector<64xf32>
    %9 = vector.shape_cast %8 : vector<64xf32> to vector<1x64xf32>
    %10 = arith.addf %7, %9 : vector<1x64xf32>
    %c0_9 = arith.constant 0 : index
    %c0_10 = arith.constant 0 : index
    %11 = vector.load %arg4[%c0_9, %c0_10] : memref<1x64xf32, #tpu.memory_space<vmem>>, vector<1x64xf32>
    tpu.vector_store %arg4[%c0_9, %c0_10], %10 {strides = array<i32>} : memref<1x64xf32, #tpu.memory_space<vmem>>, vector<1x64xf32>,
    %c0_11 = arith.constant 0 : index
    %c0_12 = arith.constant 0 : index
    %12 = vector.load %arg5[%c0_11, %c0_12] : memref<1x64xf32, #tpu.memory_space<vmem>>, vector<1x64xf32>
    %13 = arith.mulf %5, %5 : vector<256x64xf32>
    %cst_13 = arith.constant dense<0.000000e+00> : vector<64xf32>
    %14 = vector.multi_reduction <add>, %13, %cst_13 [0] : vector<256x64xf32> to vector<64xf32>
    %15 = vector.shape_cast %14 : vector<64xf32> to vector<1x64xf32>
    %16 = arith.addf %12, %15 : vector<1x64xf32>
    %c0_14 = arith.constant 0 : index
    %c0_15 = arith.constant 0 : index
    %17 = vector.load %arg5[%c0_14, %c0_15] : memref<1x64xf32, #tpu.memory_space<vmem>>, vector<1x64xf32>
    tpu.vector_store %arg5[%c0_14, %c0_15], %16 {strides = array<i32>} : memref<1x64xf32, #tpu.memory_space<vmem>>, vector<1x64xf32>,
    return
  }
  func.func @transform_0(%arg0: i32) -> (i32, i32) {
    %c0_i32 = arith.constant 0 : i32
    %c0_i32_0 = arith.constant 0 : i32
    return %arg0, %c0_i32 : i32, i32
  }
  func.func @transform_1(%arg0: i32) -> (i32, i32) {
    %c0_i32 = arith.constant 0 : i32
    %c0_i32_0 = arith.constant 0 : i32
    %c0_i32_1 = arith.constant 0 : i32
    return %c0_i32, %c0_i32_0 : i32, i32
  }
  func.func @transform_2(%arg0: i32) -> (i32, i32) {
    %c0_i32 = arith.constant 0 : i32
    %c0_i32_0 = arith.constant 0 : i32
    return %arg0, %c0_i32 : i32, i32
  }
  func.func @transform_3(%arg0: i32) -> (i32, i32) {
    %c0_i32 = arith.constant 0 : i32
    %c0_i32_0 = arith.constant 0 : i32
    %c0_i32_1 = arith.constant 0 : i32
    return %c0_i32, %c0_i32_0 : i32, i32
  }
  func.func @transform_4(%arg0: i32) -> (i32, i32) {
    %c0_i32 = arith.constant 0 : i32
    %c0_i32_0 = arith.constant 0 : i32
    %c0_i32_1 = arith.constant 0 : i32
    return %c0_i32, %c0_i32_0 : i32, i32
  }
}

</mosaic_0001>

<llo_original>
// kernel: tpu_custom_call.1
$region0: #{tpu_custom_call.1}
  #allocation0 [shape = 'u32[]', space=smem, size = 0x4, offset = 0x4, fixed_abs, tag = 'smem constant byte address 0x4 - core index']
  #allocation1 [shape = 'u32[144,128]{1,0:T(1,128)}', space=vmem, size = 0x12000, scoped, tag = 'internal scratch']
  %s0 = inlined_call_operand.hbm [shape: bf16[512,256], index: 0, kind: input, shape index: {}]
  %s1 = inlined_call_operand.vmem [shape: bf16[256,64], index: 1, kind: input, shape index: {}]
  %s2 = inlined_call_operand.vmem [shape: f32[512,64], index: 2, kind: output, shape index: {0}]
  %s3 = inlined_call_operand.hbm [shape: f32[1,64], index: 3, kind: output, shape index: {1}]
  %s4 = inlined_call_operand.hbm [shape: f32[1,64], index: 4, kind: output, shape index: {2}]
  %5 = xla_tuple %s2, %s3, %s4
  %s6 = sld [smem:[#allocation0]]
  $region65: #{tpu_custom_call.1} parent=0
    _
  %s8 = ssub.s32 1, %s6
  %s9 = scalar_select 0, %s8, %s6
  $region1: #{tpu_custom_call.1} parent=0
    #allocation2 [shape = 'u8[262144]{0}', space=vmem, size = 0x40000, scoped, tag = 'input window, operand 0']
    #allocation3 [shape = 's32[2]{0}', space=sflag, size = 0x8, scoped, tag = 'scoped memory for tpu_custom_call.1']
    #allocation4 [shape = 's32[2]{0}', space=sflag, size = 0x8, scoped, tag = 'scoped memory for tpu_custom_call.1']
    #allocation5 [shape = 'u8[512]{0}', space=vmem, size = 0x400, scoped, tag = 'output window, operand 1, single buffered']
    #allocation6 [shape = 'u8[512]{0}', space=vmem, size = 0x400, scoped, tag = 'output window, operand 2, single buffered']
    #allocation7 [shape = 's32[1]{0}', space=sflag, size = 0x4, scoped, tag = 'scoped memory for tpu_custom_call.1']
    %10 = vsyncpa [#allocation3], 0
    %s11 = scalar_lea.sflag [#allocation3], 1
    %12 = vsyncpa %s11, 0
    %13 = vsyncpa [#allocation4], 0
    %14 = vsyncpa [#allocation7], 0
    loop: start=0, step=1, limit=4
    $region2: #{tpu_custom_call.1} parent=1 // loop_pre_header
      _
    $region3: #{tpu_custom_call.1} parent=1 // loop_header
      %s16 = sphi 0, %s20
      %p17 = scmp.ge.s32.totalorder %s16, 4
      %s26 = sphi 0, %s28
      %s29 = sphi 0, %s26
      %s30 = sphi 0, %s29
      %s46 = sphi 0, %s30
      %s50 = sphi 0, %s50
      %s52 = sphi 0, %s50
      %s53 = sphi 0, %s52
      %s67 = sphi 0, %s53
      %s73 = sphi 0, %s75
      %s76 = sphi 0, %s73
      %s77 = sphi 0, %s76
      %s93 = sphi 0, %s77
      %s97 = sphi 0, %s97
      %s99 = sphi 0, %s97
      %s100 = sphi 0, %s99
      %s114 = sphi 0, %s100
      %s118 = sphi 0, %s118
      %s120 = sphi 0, %s118
      %s121 = sphi 0, %s120
      %s135 = sphi 0, %s121
    $region4: #{tpu_custom_call.1} parent=1 // loop_header_branch
      %19 = sbr.rel (%p17) target = $region8
    $region5: #{tpu_custom_call.1} parent=1 // loop_body
      %s21 = ssub.s32 %s16, 1
      %s22 = ssub.s32 %s16, 2
      %s23 = sadd.s32 %s16, 1
      %s24 = ssub.s32 %s16, %s23
      %p25 = scmp.eq.s32.totalorder %s24, 0
      %s27 = sadd.s32 %s26, 1
      %s28 = scalar_select %p25, %s26, %s27
      %p31 = pneg %p25
      %p32 = scmp.eq.s32.totalorder %s16, 1
      %p33 = por %p31, %p32
      %p34 = scmp.ne.s32.totalorder %s26, %s29
      %p35 = scmp.eq.s32.totalorder %s16, 0
      %p36 = por %p34, %p35
      %p37 = scmp.ne.s32.totalorder %s26, %s29
      %p38 = scmp.eq.s32.totalorder %s21, 1
      %p39 = por %p37, %p38
      %p40 = scmp.ne.s32.totalorder %s29, %s30
      %p41 = scmp.eq.s32.totalorder %s21, 0
      %p42 = por %p40, %p41
      %p43 = scmp.ne.s32.totalorder %s29, %s30
      %p44 = scmp.eq.s32.totalorder %s22, 1
      %p45 = por %p43, %p44
      %p47 = scmp.ne.s32.totalorder %s30, %s46
      %p48 = scmp.eq.s32.totalorder %s22, 0
      %p49 = por %p47, %p48
      %s51 = sadd.s32 %s50, 1
      %p54 = scmp.eq.s32.totalorder %s16, 1
      %p55 = scmp.ne.s32.totalorder %s50, %s52
      %p56 = scmp.eq.s32.totalorder %s16, 0
      %p57 = por %p55, %p56
      %p58 = scmp.ne.s32.totalorder %s50, %s52
      %p59 = scmp.eq.s32.totalorder %s21, 1
      %p60 = por %p58, %p59
      %p61 = scmp.ne.s32.totalorder %s52, %s53
      %p62 = scmp.eq.s32.totalorder %s21, 0
      %p63 = por %p61, %p62
      %p64 = scmp.ne.s32.totalorder %s52, %s53
      %p65 = scmp.eq.s32.totalorder %s22, 1
      %p66 = por %p64, %p65
      %p68 = scmp.ne.s32.totalorder %s53, %s67
      %p69 = scmp.eq.s32.totalorder %s22, 0
      %p70 = por %p68, %p69
      %s71 = ssub.s32 %s16, %s23
      %p72 = scmp.eq.s32.totalorder %s71, 0
      %s74 = sadd.s32 %s73, 1
      %s75 = scalar_select %p72, %s73, %s74
      %p78 = pneg %p72
      %p79 = scmp.eq.s32.totalorder %s16, 1
      %p80 = por %p78, %p79
      %p81 = scmp.ne.s32.totalorder %s73, %s76
      %p82 = scmp.eq.s32.totalorder %s16, 0
      %p83 = por %p81, %p82
      %p84 = scmp.ne.s32.totalorder %s73, %s76
      %p85 = scmp.eq.s32.totalorder %s21, 1
      %p86 = por %p84, %p85
      %p87 = scmp.ne.s32.totalorder %s76, %s77
      %p88 = scmp.eq.s32.totalorder %s21, 0
      %p89 = por %p87, %p88
      %p90 = scmp.ne.s32.totalorder %s76, %s77
      %p91 = scmp.eq.s32.totalorder %s22, 1
      %p92 = por %p90, %p91
      %p94 = scmp.ne.s32.totalorder %s77, %s93
      %p95 = scmp.eq.s32.totalorder %s22, 0
      %p96 = por %p94, %p95
      %s98 = sadd.s32 %s97, 1
      %p101 = scmp.eq.s32.totalorder %s16, 1
      %p102 = scmp.ne.s32.totalorder %s97, %s99
      %p103 = scmp.eq.s32.totalorder %s16, 0
      %p104 = por %p102, %p103
      %p105 = scmp.ne.s32.totalorder %s97, %s99
      %p106 = scmp.eq.s32.totalorder %s21, 1
      %p107 = por %p105, %p106
      %p108 = scmp.ne.s32.totalorder %s99, %s100
      %p109 = scmp.eq.s32.totalorder %s21, 0
      %p110 = por %p108, %p109
      %p111 = scmp.ne.s32.totalorder %s99, %s100
      %p112 = scmp.eq.s32.totalorder %s22, 1
      %p113 = por %p111, %p112
      %p115 = scmp.ne.s32.totalorder %s100, %s114
      %p116 = scmp.eq.s32.totalorder %s22, 0
      %p117 = por %p115, %p116
      %s119 = sadd.s32 %s118, 1
      %p122 = scmp.eq.s32.totalorder %s16, 1
      %p123 = scmp.ne.s32.totalorder %s118, %s120
      %p124 = scmp.eq.s32.totalorder %s16, 0
      %p125 = por %p123, %p124
      %p126 = scmp.ne.s32.totalorder %s118, %s120
      %p127 = scmp.eq.s32.totalorder %s21, 1
      %p128 = por %p126, %p127
      %p129 = scmp.ne.s32.totalorder %s120, %s121
      %p130 = scmp.eq.s32.totalorder %s21, 0
      %p131 = por %p129, %p130
      %p132 = scmp.ne.s32.totalorder %s120, %s121
      %p133 = scmp.eq.s32.totalorder %s22, 1
      %p134 = por %p132, %p133
      %p136 = scmp.ne.s32.totalorder %s121, %s135
      %p137 = scmp.eq.s32.totalorder %s22, 0
      %p138 = por %p136, %p137
      %p139 = scmp.le.s32.totalorder 1, %s16
      %p140 = scmp.lt.s32.totalorder %s16, 3
      %p141 = pnand %p139, %p140
      %p142 = pneg %p141
      // Predicated region
      $region9: #{tpu_custom_call.1} parent=5 // pred_check
        _
      $region10: #{tpu_custom_call.1} parent=5 // pred_check_branch
        %144 = sbr.rel (%p141) target = $region12
      $region11: #{tpu_custom_call.1} parent=5 // pred_region
        %s145 = ssub.s32 %s16, 1
        // Predicated region
        $region13: #{tpu_custom_call.1} parent=11 // pred_check
          %p146 = pneg %p63
        $region14: #{tpu_custom_call.1} parent=11 // pred_check_branch
          %148 = sbr.rel (%p146) target = $region16
        $region15: #{tpu_custom_call.1} parent=11 // pred_region
          _
        $region16: #{tpu_custom_call.1} parent=11 // pred_fallthru
          _
      $region12: #{tpu_custom_call.1} parent=5 // pred_fallthru
        _
      %p149 = scmp.lt.s32.totalorder %s16, 2
      // Predicated region
      $region17: #{tpu_custom_call.1} parent=5 // pred_check
        %p150 = pneg %p149
      $region18: #{tpu_custom_call.1} parent=5 // pred_check_branch
        %152 = sbr.rel (%p150) target = $region20
      $region19: #{tpu_custom_call.1} parent=5 // pred_region
        // Predicated region
        $region21: #{tpu_custom_call.1} parent=19 // pred_check
          %p153 = pneg %p36
        $region22: #{tpu_custom_call.1} parent=19 // pred_check_branch
          %155 = sbr.rel (%p153) target = $region24
        $region23: #{tpu_custom_call.1} parent=19 // pred_region
          %s156 = sand.u32 %s26, 1
          %s157 = scalar_lea.sflag [#allocation3], %s156
          %s158 = sand.u32 %s26, 1
          %s159 = smul.addr %s158, 256
          %s160 = scalar_lea.vmem [#allocation2], %s159
          %s161 = smul.u32 32, %s16
          %s163 = ssub.s32 4096, 4096
          %164 = vsyncadd %s157, %s163
          %s165 = smul.addr %s161, 2
          %s166 = smul.addr %s165, 64
          %s167 = scalar_lea.hbm %s0, %s166
          %s168 = sshll.u32 %s160, 4
          %s169 = int_to_ptr.vmem [resolvable:$true] %s168
          %174 = dma.hbm_to_vmem [thread:$0]  %s167, 4096, %s169, %s157, 128, 128, 8
        $region24: #{tpu_custom_call.1} parent=19 // pred_fallthru
          _
      $region20: #{tpu_custom_call.1} parent=5 // pred_fallthru
        _
      %p175 = scmp.le.s32.totalorder 1, %s16
      %p176 = scmp.lt.s32.totalorder %s16, 3
      %p177 = pnand %p175, %p176
      %p178 = pneg %p177
      // Predicated region
      $region25: #{tpu_custom_call.1} parent=5 // pred_check
        _
      $region26: #{tpu_custom_call.1} parent=5 // pred_check_branch
        %180 = sbr.rel (%p177) target = $region28
      $region27: #{tpu_custom_call.1} parent=5 // pred_region
        %s181 = ssub.s32 %s16, 1
        %s182 = sand.u32 %s29, 1
        %s183 = scalar_lea.sflag [#allocation3], %s182
        %s184 = sand.u32 %s29, 1
        %s185 = smul.addr %s184, 256
        %s186 = scalar_lea.vmem [#allocation2], %s185
        // Predicated region
        $region29: #{tpu_custom_call.1} parent=27 // pred_check
          %p187 = pneg %p42
        $region30: #{tpu_custom_call.1} parent=27 // pred_check_branch
          %189 = sbr.rel (%p187) target = $region32
        $region31: #{tpu_custom_call.1} parent=27 // pred_region
          %190 = dma.done %s183, 4096
        $region32: #{tpu_custom_call.1} parent=27 // pred_fallthru
          _
        %s191 = sand.u32 %s29, 1
        %s192 = scalar_lea.sflag [#allocation3], %s191
        %s193 = sand.u32 %s29, 1
        %s194 = smul.addr %s193, 256
        %s195 = scalar_lea.vmem [#allocation2], %s194
        %p196 = pneg %p42
        %p197 = pneg %p39
        %p198 = pneg %p63
        %p199 = pneg %p60
        %p200 = pneg %p89
        %p201 = pneg %p86
        %s202 = smul.u32 32, %s21
        %p203 = scmp.lt.s32.totalorder %s202, 63
        %s204 = scalar_select %p203, %s202, 63
        %s205 = smul.addr %s204, 8
        %s206 = scalar_lea.vmem %s2, %s205
        %p207 = pneg %p110
        %p208 = pneg %p107
        %p209 = pneg %p131
        %p210 = pneg %p128
        %s211 = smul.u32 32, %s21
        %s212 = smul.u32 32, %s21
        %p213 = scmp.lt.s32.totalorder %s212, 63
        %s214 = scalar_select %p213, %s212, 63
        %s215 = smul.addr %s214, 8
        %s216 = scalar_lea.vmem %s2, %s215
        %s217 = smul.u32 32, %s21
        %p219 = scmp.eq.s32.totalorder %s21, 0
        // Predicated region
        $region33: #{tpu_custom_call.1} parent=27 // pred_check
          %p220 = pneg %p219
        $region34: #{tpu_custom_call.1} parent=27 // pred_check_branch
          %222 = sbr.rel (%p220) target = $region36
        $region35: #{tpu_custom_call.1} parent=27 // pred_region
          %vm223 = vcmask 516096
          %224 = vst.msk [vmem:[#allocation5] sm:$0x1] %vm223, 0.0
          %225 = vst.msk [vmem:[#allocation6] sm:$0x1] %vm223, 0.0
        $region36: #{tpu_custom_call.1} parent=27 // pred_fallthru
          _
        %v226 = vld [vmem:[%s186] sm:$0xff]
        %v227 = vld [vmem:[%s186 + $0x8] sm:$0xff]
        %v228 = vld [vmem:[%s186 + $0x10] sm:$0xff]
        %v229 = vld [vmem:[%s186 + $0x18] sm:$0xff]
        %v230 = vld [vmem:[%s186 + $0x20] sm:$0xff]
        %v231 = vld [vmem:[%s186 + $0x28] sm:$0xff]
        %v232 = vld [vmem:[%s186 + $0x30] sm:$0xff]
        %v233 = vld [vmem:[%s186 + $0x38] sm:$0xff]
        %v234 = vld [vmem:[%s186 + $0x40] sm:$0xff]
        %v235 = vld [vmem:[%s186 + $0x48] sm:$0xff]
        %v236 = vld [vmem:[%s186 + $0x50] sm:$0xff]
        %v237 = vld [vmem:[%s186 + $0x58] sm:$0xff]
        %v238 = vld [vmem:[%s186 + $0x60] sm:$0xff]
        %v239 = vld [vmem:[%s186 + $0x68] sm:$0xff]
        %v240 = vld [vmem:[%s186 + $0x70] sm:$0xff]
        %v241 = vld [vmem:[%s186 + $0x78] sm:$0xff]
        %v242 = vld [vmem:[%s186 + $0x80] sm:$0xff]
        %v243 = vld [vmem:[%s186 + $0x88] sm:$0xff]
        %v244 = vld [vmem:[%s186 + $0x90] sm:$0xff]
        %v245 = vld [vmem:[%s186 + $0x98] sm:$0xff]
        %v246 = vld [vmem:[%s186 + $0xa0] sm:$0xff]
        %v247 = vld [vmem:[%s186 + $0xa8] sm:$0xff]
        %v248 = vld [vmem:[%s186 + $0xb0] sm:$0xff]
        %v249 = vld [vmem:[%s186 + $0xb8] sm:$0xff]
        %v250 = vld [vmem:[%s186 + $0xc0] sm:$0xff]
        %v251 = vld [vmem:[%s186 + $0xc8] sm:$0xff]
        %v252 = vld [vmem:[%s186 + $0xd0] sm:$0xff]
        %v253 = vld [vmem:[%s186 + $0xd8] sm:$0xff]
        %v254 = vld [vmem:[%s186 + $0xe0] sm:$0xff]
        %v255 = vld [vmem:[%s186 + $0xe8] sm:$0xff]
        %v256 = vld [vmem:[%s186 + $0xf0] sm:$0xff]
        %v257 = vld [vmem:[%s186 + $0xf8] sm:$0xff]
        %v258 = vld [vmem:[%s1] sm:$0xf]
        %v259 = vld [vmem:[%s1 + $0x4] sm:$0xf]
        %v260 = vld [vmem:[%s1 + $0x8] sm:$0xf]
        %v261 = vld [vmem:[%s1 + $0xc] sm:$0xf]
        %v262 = vld [vmem:[%s1 + $0x10] sm:$0xf]
        %v263 = vld [vmem:[%s1 + $0x14] sm:$0xf]
        %v264 = vld [vmem:[%s1 + $0x18] sm:$0xf]
        %v265 = vld [vmem:[%s1 + $0x1c] sm:$0xf]
        %v266 = vld [vmem:[%s1 + $0x20] sm:$0xf]
        %v267 = vld [vmem:[%s1 + $0x24] sm:$0xf]
        %v268 = vld [vmem:[%s1 + $0x28] sm:$0xf]
        %v269 = vld [vmem:[%s1 + $0x2c] sm:$0xf]
        %v270 = vld [vmem:[%s1 + $0x30] sm:$0xf]
        %v271 = vld [vmem:[%s1 + $0x34] sm:$0xf]
        %v272 = vld [vmem:[%s1 + $0x38] sm:$0xf]
        %v273 = vld [vmem:[%s1 + $0x3c] sm:$0xf]
        %v274 = vld [vmem:[%s1 + $0x40] sm:$0xf]
        %v275 = vld [vmem:[%s1 + $0x44] sm:$0xf]
        %v276 = vld [vmem:[%s1 + $0x48] sm:$0xf]
        %v277 = vld [vmem:[%s1 + $0x4c] sm:$0xf]
        %v278 = vld [vmem:[%s1 + $0x50] sm:$0xf]
        %v279 = vld [vmem:[%s1 + $0x54] sm:$0xf]
        %v280 = vld [vmem:[%s1 + $0x58] sm:$0xf]
        %v281 = vld [vmem:[%s1 + $0x5c] sm:$0xf]
        %v282 = vld [vmem:[%s1 + $0x60] sm:$0xf]
        %v283 = vld [vmem:[%s1 + $0x64] sm:$0xf]
        %v284 = vld [vmem:[%s1 + $0x68] sm:$0xf]
        %v285 = vld [vmem:[%s1 + $0x6c] sm:$0xf]
        %v286 = vld [vmem:[%s1 + $0x70] sm:$0xf]
        %v287 = vld [vmem:[%s1 + $0x74] sm:$0xf]
        %v288 = vld [vmem:[%s1 + $0x78] sm:$0xf]
        %v289 = vld [vmem:[%s1 + $0x7c] sm:$0xf]
        %v322 = vunpack.c.l.b16 %v226
        %v323 = vunpack.c.h.b16 %v226
        %v324 = vunpack.c.l.b16 %v227
        %v325 = vunpack.c.h.b16 %v227
        %v326 = vunpack.c.l.b16 %v228
        %v327 = vunpack.c.h.b16 %v228
        %v328 = vunpack.c.l.b16 %v229
        %v329 = vunpack.c.h.b16 %v229
        %v330 = vunpack.c.l.b16 %v230
        %v331 = vunpack.c.h.b16 %v230
        %v332 = vunpack.c.l.b16 %v231
        %v333 = vunpack.c.h.b16 %v231
        %v334 = vunpack.c.l.b16 %v232
        %v335 = vunpack.c.h.b16 %v232
        %v336 = vunpack.c.l.b16 %v233
        %v337 = vunpack.c.h.b16 %v233
        %v338 = vunpack.c.l.b16 %v234
        %v339 = vunpack.c.h.b16 %v234
        %v340 = vunpack.c.l.b16 %v235
        %v341 = vunpack.c.h.b16 %v235
        %v342 = vunpack.c.l.b16 %v236
        %v343 = vunpack.c.h.b16 %v236
        %v344 = vunpack.c.l.b16 %v237
        %v345 = vunpack.c.h.b16 %v237
        %v346 = vunpack.c.l.b16 %v238
        %v347 = vunpack.c.h.b16 %v238
        %v348 = vunpack.c.l.b16 %v239
        %v349 = vunpack.c.h.b16 %v239
        %v350 = vunpack.c.l.b16 %v240
        %v351 = vunpack.c.h.b16 %v240
        %v352 = vunpack.c.l.b16 %v241
        %v353 = vunpack.c.h.b16 %v241
        %v354 = vunpack.c.l.b16 %v242
        %v355 = vunpack.c.h.b16 %v242
        %v356 = vunpack.c.l.b16 %v243
        %v357 = vunpack.c.h.b16 %v243
        %v358 = vunpack.c.l.b16 %v244
        %v359 = vunpack.c.h.b16 %v244
        %v360 = vunpack.c.l.b16 %v245
        %v361 = vunpack.c.h.b16 %v245
        %v362 = vunpack.c.l.b16 %v246
        %v363 = vunpack.c.h.b16 %v246
        %v364 = vunpack.c.l.b16 %v247
        %v365 = vunpack.c.h.b16 %v247
        %v366 = vunpack.c.l.b16 %v248
        %v367 = vunpack.c.h.b16 %v248
        %v368 = vunpack.c.l.b16 %v249
        %v369 = vunpack.c.h.b16 %v249
        %v370 = vunpack.c.l.b16 %v250
        %v371 = vunpack.c.h.b16 %v250
        %v372 = vunpack.c.l.b16 %v251
        %v373 = vunpack.c.h.b16 %v251
        %v374 = vunpack.c.l.b16 %v252
        %v375 = vunpack.c.h.b16 %v252
        %v376 = vunpack.c.l.b16 %v253
        %v377 = vunpack.c.h.b16 %v253
        %v378 = vunpack.c.l.b16 %v254
        %v379 = vunpack.c.h.b16 %v254
        %v380 = vunpack.c.l.b16 %v255
        %v381 = vunpack.c.h.b16 %v255
        %v382 = vunpack.c.l.b16 %v256
        %v383 = vunpack.c.h.b16 %v256
        %v384 = vunpack.c.l.b16 %v257
        %v385 = vunpack.c.h.b16 %v257
        %v386 = vpack.c.b16 %v324, %v322
        %v387 = vpack.c.b16 %v325, %v323
        %v388 = vpack.c.b16 %v328, %v326
        %v389 = vpack.c.b16 %v329, %v327
        %v390 = vpack.c.b16 %v332, %v330
        %v391 = vpack.c.b16 %v333, %v331
        %v392 = vpack.c.b16 %v336, %v334
        %v393 = vpack.c.b16 %v337, %v335
        %v394 = vpack.c.b16 %v340, %v338
        %v395 = vpack.c.b16 %v341, %v339
        %v396 = vpack.c.b16 %v344, %v342
        %v397 = vpack.c.b16 %v345, %v343
        %v398 = vpack.c.b16 %v348, %v346
        %v399 = vpack.c.b16 %v349, %v347
        %v400 = vpack.c.b16 %v352, %v350
        %v401 = vpack.c.b16 %v353, %v351
        %v402 = vpack.c.b16 %v356, %v354
        %v403 = vpack.c.b16 %v357, %v355
        %v404 = vpack.c.b16 %v360, %v358
        %v405 = vpack.c.b16 %v361, %v359
        %v406 = vpack.c.b16 %v364, %v362
        %v407 = vpack.c.b16 %v365, %v363
        %v408 = vpack.c.b16 %v368, %v366
        %v409 = vpack.c.b16 %v369, %v367
        %v410 = vpack.c.b16 %v372, %v370
        %v411 = vpack.c.b16 %v373, %v371
        %v412 = vpack.c.b16 %v376, %v374
        %v413 = vpack.c.b16 %v377, %v375
        %v414 = vpack.c.b16 %v380, %v378
        %v415 = vpack.c.b16 %v381, %v379
        %v416 = vpack.c.b16 %v384, %v382
        %v417 = vpack.c.b16 %v385, %v383
        %v482 = vunpack.c.l.b16 %v258
        %v483 = vunpack.c.l.b16 %v259
        %v484 = vunpack.c.l.b16 %v260
        %v485 = vunpack.c.l.b16 %v261
        %v486 = vunpack.c.l.b16 %v262
        %v487 = vunpack.c.l.b16 %v263
        %v488 = vunpack.c.l.b16 %v264
        %v489 = vunpack.c.l.b16 %v265
        %v490 = vunpack.c.l.b16 %v266
        %v491 = vunpack.c.l.b16 %v267
        %v492 = vunpack.c.l.b16 %v268
        %v493 = vunpack.c.l.b16 %v269
        %v494 = vunpack.c.l.b16 %v270
        %v495 = vunpack.c.l.b16 %v271
        %v496 = vunpack.c.l.b16 %v272
        %v497 = vunpack.c.l.b16 %v273
        %v498 = vunpack.c.l.b16 %v274
        %v499 = vunpack.c.l.b16 %v275
        %v500 = vunpack.c.l.b16 %v276
        %v501 = vunpack.c.l.b16 %v277
        %v502 = vunpack.c.l.b16 %v278
        %v503 = vunpack.c.l.b16 %v279
        %v504 = vunpack.c.l.b16 %v280
        %v505 = vunpack.c.l.b16 %v281
        %v506 = vunpack.c.l.b16 %v282
        %v507 = vunpack.c.l.b16 %v283
        %v508 = vunpack.c.l.b16 %v284
        %v509 = vunpack.c.l.b16 %v285
        %v510 = vunpack.c.l.b16 %v286
        %v511 = vunpack.c.l.b16 %v287
        %v512 = vunpack.c.l.b16 %v288
        %v513 = vunpack.c.l.b16 %v289
        %v514 = vpack.c.b16 %v483, %v482
        %v515 = vpack.c.b16 %v485, %v484
        %v516 = vpack.c.b16 %v487, %v486
        %v517 = vpack.c.b16 %v489, %v488
        %v518 = vpack.c.b16 %v491, %v490
        %v519 = vpack.c.b16 %v493, %v492
        %v520 = vpack.c.b16 %v495, %v494
        %v521 = vpack.c.b16 %v497, %v496
        %v522 = vpack.c.b16 %v499, %v498
        %v523 = vpack.c.b16 %v501, %v500
        %v524 = vpack.c.b16 %v503, %v502
        %v525 = vpack.c.b16 %v505, %v504
        %v526 = vpack.c.b16 %v507, %v506
        %v527 = vpack.c.b16 %v509, %v508
        %v528 = vpack.c.b16 %v511, %v510
        %v529 = vpack.c.b16 %v513, %v512
        %546 = vmatprep.subr.bf16.mxu0 0
        %547 = vmatpush1.bf16.msra.mxu0 %v514
        %548 = vmatprep.subr.bf16.mxu0 0
        %549 = vmatpush1.bf16.msra.mxu0 %v515
        %550 = vmatprep.subr.bf16.mxu0 0
        %551 = vmatpush1.bf16.msra.mxu0 %v516
        %552 = vmatprep.subr.bf16.mxu0 0
        %553 = vmatpush1.bf16.msra.mxu0 %v517
        %554 = vmatprep.subr.bf16.mxu0 0
        %555 = vmatpush1.bf16.msra.mxu0 %v518
        %556 = vmatprep.subr.bf16.mxu0 0
        %557 = vmatpush1.bf16.msra.mxu0 %v519
        %558 = vmatprep.subr.bf16.mxu0 0
        %559 = vmatpush1.bf16.msra.mxu0 %v520
        %560 = vmatprep.subr.bf16.mxu0 0
        %561 = vmatpush1.bf16.msra.mxu0 %v521
        %562 = vmatprep.subr.bf16.mxu0 0
        %563 = vmatpush1.bf16.msra.mxu0 %v522
        %564 = vmatprep.subr.bf16.mxu0 0
        %565 = vmatpush1.bf16.msra.mxu0 %v523
        %566 = vmatprep.subr.bf16.mxu0 0
        %567 = vmatpush1.bf16.msra.mxu0 %v524
        %568 = vmatprep.subr.bf16.mxu0 0
        %569 = vmatpush1.bf16.msra.mxu0 %v525
        %570 = vmatprep.subr.bf16.mxu0 0
        %571 = vmatpush1.bf16.msra.mxu0 %v526
        %572 = vmatprep.subr.bf16.mxu0 0
        %573 = vmatpush1.bf16.msra.mxu0 %v527
        %574 = vmatprep.subr.bf16.mxu0 0
        %575 = vmatpush1.bf16.msra.mxu0 %v528
        %576 = vmatprep.subr.bf16.mxu0 0
        %577 = vmatpush1.bf16.msra.mxu0 %v529
        %578 = vmatprep.mubr.bf16.mxu0 %v387
        %579 = vmatmul.mubr.bf16.gmra.mrb[0].mxu0 %v386
        %v580 = vpop.f32.mrb[0].mxu0
        %v581 = vadd.f32 0.0, %v580
        %v582 = vpop.f32.mrb[0].mxu0
        %v583 = vpop.f32.mrb[0].mxu0
        %v584 = vadd.f32 0.0, %v583
        %v585 = vpop.f32.mrb[0].mxu0
        %586 = vmatprep.mubr.bf16.mxu0 %v389
        %587 = vmatmul.mubr.bf16.gmra.mrb[0].mxu0 %v388
        %v588 = vpop.f32.mrb[0].mxu0
        %v589 = vadd.f32 0.0, %v588
        %v590 = vpop.f32.mrb[0].mxu0
        %v591 = vpop.f32.mrb[0].mxu0
        %v592 = vadd.f32 0.0, %v591
        %v593 = vpop.f32.mrb[0].mxu0
        %594 = vmatprep.mubr.bf16.mxu0 %v391
        %595 = vmatmul.mubr.bf16.gmra.mrb[0].mxu0 %v390
        %v596 = vpop.f32.mrb[0].mxu0
        %v597 = vadd.f32 0.0, %v596
        %v598 = vpop.f32.mrb[0].mxu0
        %v599 = vpop.f32.mrb[0].mxu0
        %v600 = vadd.f32 0.0, %v599
        %v601 = vpop.f32.mrb[0].mxu0
        %602 = vmatprep.mubr.bf16.mxu0 %v393
        %603 = vmatmul.mubr.bf16.gmra.mrb[0].mxu0 %v392
        %v604 = vpop.f32.mrb[0].mxu0
        %v605 = vadd.f32 0.0, %v604
        %v606 = vpop.f32.mrb[0].mxu0
        %v607 = vpop.f32.mrb[0].mxu0
        %v608 = vadd.f32 0.0, %v607
        %v609 = vpop.f32.mrb[0].mxu0
        %610 = vmatprep.mubr.bf16.mxu0 %v395
        %611 = vmatmul.mubr.bf16.gmra.mrb[0].mxu0 %v394
        %v612 = vpop.f32.mrb[0].mxu0
        %v613 = vadd.f32 0.0, %v612
        %v614 = vpop.f32.mrb[0].mxu0
        %v615 = vpop.f32.mrb[0].mxu0
        %v616 = vadd.f32 0.0, %v615
        %v617 = vpop.f32.mrb[0].mxu0
        %618 = vmatprep.mubr.bf16.mxu0 %v397
        %619 = vmatmul.mubr.bf16.gmra.mrb[0].mxu0 %v396
        %v620 = vpop.f32.mrb[0].mxu0
        %v621 = vadd.f32 0.0, %v620
        %v622 = vpop.f32.mrb[0].mxu0
        %v623 = vpop.f32.mrb[0].mxu0
        %v624 = vadd.f32 0.0, %v623
        %v625 = vpop.f32.mrb[0].mxu0
        %626 = vmatprep.mubr.bf16.mxu0 %v399
        %627 = vmatmul.mubr.bf16.gmra.mrb[0].mxu0 %v398
        %v628 = vpop.f32.mrb[0].mxu0
        %v629 = vadd.f32 0.0, %v628
        %v630 = vpop.f32.mrb[0].mxu0
        %v631 = vpop.f32.mrb[0].mxu0
        %v632 = vadd.f32 0.0, %v631
        %v633 = vpop.f32.mrb[0].mxu0
        %634 = vmatprep.mubr.bf16.mxu0 %v401
        %635 = vmatmul.mubr.bf16.gmra.mrb[0].mxu0 %v400
        %v636 = vpop.f32.mrb[0].mxu0
        %v637 = vadd.f32 0.0, %v636
        %v638 = vpop.f32.mrb[0].mxu0
        %v639 = vpop.f32.mrb[0].mxu0
        %v640 = vadd.f32 0.0, %v639
        %v641 = vpop.f32.mrb[0].mxu0
        %642 = vmatprep.mubr.bf16.mxu0 %v403
        %643 = vmatmul.mubr.bf16.gmra.mrb[0].mxu0 %v402
        %v644 = vpop.f32.mrb[0].mxu0
        %v645 = vadd.f32 0.0, %v644
        %v646 = vpop.f32.mrb[0].mxu0
        %v647 = vpop.f32.mrb[0].mxu0
        %v648 = vadd.f32 0.0, %v647
        %v649 = vpop.f32.mrb[0].mxu0
        %650 = vmatprep.mubr.bf16.mxu0 %v405
        %651 = vmatmul.mubr.bf16.gmra.mrb[0].mxu0 %v404
        %v652 = vpop.f32.mrb[0].mxu0
        %v653 = vadd.f32 0.0, %v652
        %v654 = vpop.f32.mrb[0].mxu0
        %v655 = vpop.f32.mrb[0].mxu0
        %v656 = vadd.f32 0.0, %v655
        %v657 = vpop.f32.mrb[0].mxu0
        %658 = vmatprep.mubr.bf16.mxu0 %v407
        %659 = vmatmul.mubr.bf16.gmra.mrb[0].mxu0 %v406
        %v660 = vpop.f32.mrb[0].mxu0
        %v661 = vadd.f32 0.0, %v660
        %v662 = vpop.f32.mrb[0].mxu0
        %v663 = vpop.f32.mrb[0].mxu0
        %v664 = vadd.f32 0.0, %v663
        %v665 = vpop.f32.mrb[0].mxu0
        %666 = vmatprep.mubr.bf16.mxu0 %v409
        %667 = vmatmul.mubr.bf16.gmra.mrb[0].mxu0 %v408
        %v668 = vpop.f32.mrb[0].mxu0
        %v669 = vadd.f32 0.0, %v668
        %v670 = vpop.f32.mrb[0].mxu0
        %v671 = vpop.f32.mrb[0].mxu0
        %v672 = vadd.f32 0.0, %v671
        %v673 = vpop.f32.mrb[0].mxu0
        %674 = vmatprep.mubr.bf16.mxu0 %v411
        %675 = vmatmul.mubr.bf16.gmra.mrb[0].mxu0 %v410
        %v676 = vpop.f32.mrb[0].mxu0
        %v677 = vadd.f32 0.0, %v676
        %v678 = vpop.f32.mrb[0].mxu0
        %v679 = vpop.f32.mrb[0].mxu0
        %v680 = vadd.f32 0.0, %v679
        %v681 = vpop.f32.mrb[0].mxu0
        %682 = vmatprep.mubr.bf16.mxu0 %v413
        %683 = vmatmul.mubr.bf16.gmra.mrb[0].mxu0 %v412
        %v684 = vpop.f32.mrb[0].mxu0
        %v685 = vadd.f32 0.0, %v684
        %v686 = vpop.f32.mrb[0].mxu0
        %v687 = vpop.f32.mrb[0].mxu0
        %v688 = vadd.f32 0.0, %v687
        %v689 = vpop.f32.mrb[0].mxu0
        %690 = vmatprep.mubr.bf16.mxu0 %v415
        %691 = vmatmul.mubr.bf16.gmra.mrb[0].mxu0 %v414
        %v692 = vpop.f32.mrb[0].mxu0
        %v693 = vadd.f32 0.0, %v692
        %v694 = vpop.f32.mrb[0].mxu0
        %v695 = vpop.f32.mrb[0].mxu0
        %v696 = vadd.f32 0.0, %v695
        %v697 = vpop.f32.mrb[0].mxu0
        %698 = vmatprep.mubr.bf16.mxu0 %v417
        %699 = vmatmul.mubr.bf16.gmra.mrb[0].mxu0 %v416
        %v700 = vpop.f32.mrb[0].mxu0
        %v701 = vadd.f32 0.0, %v700
        %v702 = vpop.f32.mrb[0].mxu0
        %v703 = vpop.f32.mrb[0].mxu0
        %v704 = vadd.f32 0.0, %v703
        %v705 = vpop.f32.mrb[0].mxu0
        %706 = vdwg.mxu0
        %vm707 = vcmask 523264
        %708 = vst.msk [vmem:[%s216] sm:$0xff] %vm707, %v581
        %709 = vst.msk [vmem:[%s216 + $0x8] sm:$0xff] %vm707, %v584
        %710 = vst.msk [vmem:[%s216 + $0x10] sm:$0xff] %vm707, %v589
        %711 = vst.msk [vmem:[%s216 + $0x18] sm:$0xff] %vm707, %v592
        %712 = vst.msk [vmem:[%s216 + $0x20] sm:$0xff] %vm707, %v597
        %713 = vst.msk [vmem:[%s216 + $0x28] sm:$0xff] %vm707, %v600
        %714 = vst.msk [vmem:[%s216 + $0x30] sm:$0xff] %vm707, %v605
        %715 = vst.msk [vmem:[%s216 + $0x38] sm:$0xff] %vm707, %v608
        %716 = vst.msk [vmem:[%s216 + $0x40] sm:$0xff] %vm707, %v613
        %717 = vst.msk [vmem:[%s216 + $0x48] sm:$0xff] %vm707, %v616
        %718 = vst.msk [vmem:[%s216 + $0x50] sm:$0xff] %vm707, %v621
        %719 = vst.msk [vmem:[%s216 + $0x58] sm:$0xff] %vm707, %v624
        %720 = vst.msk [vmem:[%s216 + $0x60] sm:$0xff] %vm707, %v629
        %721 = vst.msk [vmem:[%s216 + $0x68] sm:$0xff] %vm707, %v632
        %722 = vst.msk [vmem:[%s216 + $0x70] sm:$0xff] %vm707, %v637
        %723 = vst.msk [vmem:[%s216 + $0x78] sm:$0xff] %vm707, %v640
        %724 = vst.msk [vmem:[%s216 + $0x80] sm:$0xff] %vm707, %v645
        %725 = vst.msk [vmem:[%s216 + $0x88] sm:$0xff] %vm707, %v648
        %726 = vst.msk [vmem:[%s216 + $0x90] sm:$0xff] %vm707, %v653
        %727 = vst.msk [vmem:[%s216 + $0x98] sm:$0xff] %vm707, %v656
        %728 = vst.msk [vmem:[%s216 + $0xa0] sm:$0xff] %vm707, %v661
        %729 = vst.msk [vmem:[%s216 + $0xa8] sm:$0xff] %vm707, %v664
        %730 = vst.msk [vmem:[%s216 + $0xb0] sm:$0xff] %vm707, %v669
        %731 = vst.msk [vmem:[%s216 + $0xb8] sm:$0xff] %vm707, %v672
        %732 = vst.msk [vmem:[%s216 + $0xc0] sm:$0xff] %vm707, %v677
        %733 = vst.msk [vmem:[%s216 + $0xc8] sm:$0xff] %vm707, %v680
        %734 = vst.msk [vmem:[%s216 + $0xd0] sm:$0xff] %vm707, %v685
        %735 = vst.msk [vmem:[%s216 + $0xd8] sm:$0xff] %vm707, %v688
        %736 = vst.msk [vmem:[%s216 + $0xe0] sm:$0xff] %vm707, %v693
        %737 = vst.msk [vmem:[%s216 + $0xe8] sm:$0xff] %vm707, %v696
        %738 = vst.msk [vmem:[%s216 + $0xf0] sm:$0xff] %vm707, %v701
        %739 = vst.msk [vmem:[%s216 + $0xf8] sm:$0xff] %vm707, %v704
        %v740 = vld [vmem:[#allocation5] sm:$0x1]
        %v741 = vsel %vm707, %v581, 0.0
        %v742 = vsel %vm707, %v584, 0.0
        %v743 = vadd.f32 %v741, %v742
        %v744 = vsel %vm707, %v589, 0.0
        %v745 = vadd.f32 %v743, %v744
        %v746 = vsel %vm707, %v592, 0.0
        %v747 = vadd.f32 %v745, %v746
        %v748 = vsel %vm707, %v597, 0.0
        %v749 = vadd.f32 %v747, %v748
        %v750 = vsel %vm707, %v600, 0.0
        %v751 = vadd.f32 %v749, %v750
        %v752 = vsel %vm707, %v605, 0.0
        %v753 = vadd.f32 %v751, %v752
        %v754 = vsel %vm707, %v608, 0.0
        %v755 = vadd.f32 %v753, %v754
        %v756 = vsel %vm707, %v613, 0.0
        %v757 = vadd.f32 %v755, %v756
        %v758 = vsel %vm707, %v616, 0.0
        %v759 = vadd.f32 %v757, %v758
        %v760 = vsel %vm707, %v621, 0.0
        %v761 = vadd.f32 %v759, %v760
        %v762 = vsel %vm707, %v624, 0.0
        %v763 = vadd.f32 %v761, %v762
        %v764 = vsel %vm707, %v629, 0.0
        %v765 = vadd.f32 %v763, %v764
        %v766 = vsel %vm707, %v632, 0.0
        %v767 = vadd.f32 %v765, %v766
        %v768 = vsel %vm707, %v637, 0.0
        %v769 = vadd.f32 %v767, %v768
        %v770 = vsel %vm707, %v640, 0.0
        %v771 = vadd.f32 %v769, %v770
        %v772 = vsel %vm707, %v645, 0.0
        %v773 = vadd.f32 %v771, %v772
        %v774 = vsel %vm707, %v648, 0.0
        %v775 = vadd.f32 %v773, %v774
        %v776 = vsel %vm707, %v653, 0.0
        %v777 = vadd.f32 %v775, %v776
        %v778 = vsel %vm707, %v656, 0.0
        %v779 = vadd.f32 %v777, %v778
        %v780 = vsel %vm707, %v661, 0.0
        %v781 = vadd.f32 %v779, %v780
        %v782 = vsel %vm707, %v664, 0.0
        %v783 = vadd.f32 %v781, %v782
        %v784 = vsel %vm707, %v669, 0.0
        %v785 = vadd.f32 %v783, %v784
        %v786 = vsel %vm707, %v672, 0.0
        %v787 = vadd.f32 %v785, %v786
        %v788 = vsel %vm707, %v677, 0.0
        %v789 = vadd.f32 %v787, %v788
        %v790 = vsel %vm707, %v680, 0.0
        %v791 = vadd.f32 %v789, %v790
        %v792 = vsel %vm707, %v685, 0.0
        %v793 = vadd.f32 %v791, %v792
        %v794 = vsel %vm707, %v688, 0.0
        %v795 = vadd.f32 %v793, %v794
        %v796 = vsel %vm707, %v693, 0.0
        %v797 = vadd.f32 %v795, %v796
        %v798 = vsel %vm707, %v696, 0.0
        %v799 = vadd.f32 %v797, %v798
        %v800 = vsel %vm707, %v701, 0.0
        %v801 = vadd.f32 %v799, %v800
        %v802 = vsel %vm707, %v704, 0.0
        %v803 = vadd.f32 %v801, %v802
        %v804 = vrot.slane %v803, 4
        %v805 = vadd.f32 %v803, %v804
        %v806 = vrot.slane %v805, 2
        %v807 = vadd.f32 %v805, %v806
        %v808 = vrot.slane %v807, 1
        %v809 = vadd.f32 %v807, %v808
        %v810 = vadd.f32 %v740, %v809
        %vm811 = vcmask 516096
        %812 = vst.msk [vmem:[#allocation5] sm:$0x1] %vm811, %v810
        %v813 = vld [vmem:[#allocation6] sm:$0x1]
        %v814 = vmul.f32 %v581, %v581
        %v815 = vmul.f32 %v584, %v584
        %v816 = vmul.f32 %v589, %v589
        %v817 = vmul.f32 %v592, %v592
        %v818 = vmul.f32 %v597, %v597
        %v819 = vmul.f32 %v600, %v600
        %v820 = vmul.f32 %v605, %v605
        %v821 = vmul.f32 %v608, %v608
        %v822 = vmul.f32 %v613, %v613
        %v823 = vmul.f32 %v616, %v616
        %v824 = vmul.f32 %v621, %v621
        %v825 = vmul.f32 %v624, %v624
        %v826 = vmul.f32 %v629, %v629
        %v827 = vmul.f32 %v632, %v632
        %v828 = vmul.f32 %v637, %v637
        %v829 = vmul.f32 %v640, %v640
        %v830 = vmul.f32 %v645, %v645
        %v831 = vmul.f32 %v648, %v648
        %v832 = vmul.f32 %v653, %v653
        %v833 = vmul.f32 %v656, %v656
        %v834 = vmul.f32 %v661, %v661
        %v835 = vmul.f32 %v664, %v664
        %v836 = vmul.f32 %v669, %v669
        %v837 = vmul.f32 %v672, %v672
        %v838 = vmul.f32 %v677, %v677
        %v839 = vmul.f32 %v680, %v680
        %v840 = vmul.f32 %v685, %v685
        %v841 = vmul.f32 %v688, %v688
        %v842 = vmul.f32 %v693, %v693
        %v843 = vmul.f32 %v696, %v696
        %v844 = vmul.f32 %v701, %v701
        %v845 = vmul.f32 %v704, %v704
        %v846 = vsel %vm707, %v814, 0.0
        %v847 = vsel %vm707, %v815, 0.0
        %v848 = vadd.f32 %v846, %v847
        %v849 = vsel %vm707, %v816, 0.0
        %v850 = vadd.f32 %v848, %v849
        %v851 = vsel %vm707, %v817, 0.0
        %v852 = vadd.f32 %v850, %v851
        %v853 = vsel %vm707, %v818, 0.0
        %v854 = vadd.f32 %v852, %v853
        %v855 = vsel %vm707, %v819, 0.0
        %v856 = vadd.f32 %v854, %v855
        %v857 = vsel %vm707, %v820, 0.0
        %v858 = vadd.f32 %v856, %v857
        %v859 = vsel %vm707, %v821, 0.0
        %v860 = vadd.f32 %v858, %v859
        %v861 = vsel %vm707, %v822, 0.0
        %v862 = vadd.f32 %v860, %v861
        %v863 = vsel %vm707, %v823, 0.0
        %v864 = vadd.f32 %v862, %v863
        %v865 = vsel %vm707, %v824, 0.0
        %v866 = vadd.f32 %v864, %v865
        %v867 = vsel %vm707, %v825, 0.0
        %v868 = vadd.f32 %v866, %v867
        %v869 = vsel %vm707, %v826, 0.0
        %v870 = vadd.f32 %v868, %v869
        %v871 = vsel %vm707, %v827, 0.0
        %v872 = vadd.f32 %v870, %v871
        %v873 = vsel %vm707, %v828, 0.0
        %v874 = vadd.f32 %v872, %v873
        %v875 = vsel %vm707, %v829, 0.0
        %v876 = vadd.f32 %v874, %v875
        %v877 = vsel %vm707, %v830, 0.0
        %v878 = vadd.f32 %v876, %v877
        %v879 = vsel %vm707, %v831, 0.0
        %v880 = vadd.f32 %v878, %v879
        %v881 = vsel %vm707, %v832, 0.0
        %v882 = vadd.f32 %v880, %v881
        %v883 = vsel %vm707, %v833, 0.0
        %v884 = vadd.f32 %v882, %v883
        %v885 = vsel %vm707, %v834, 0.0
        %v886 = vadd.f32 %v884, %v885
        %v887 = vsel %vm707, %v835, 0.0
        %v888 = vadd.f32 %v886, %v887
        %v889 = vsel %vm707, %v836, 0.0
        %v890 = vadd.f32 %v888, %v889
        %v891 = vsel %vm707, %v837, 0.0
        %v892 = vadd.f32 %v890, %v891
        %v893 = vsel %vm707, %v838, 0.0
        %v894 = vadd.f32 %v892, %v893
        %v895 = vsel %vm707, %v839, 0.0
        %v896 = vadd.f32 %v894, %v895
        %v897 = vsel %vm707, %v840, 0.0
        %v898 = vadd.f32 %v896, %v897
        %v899 = vsel %vm707, %v841, 0.0
        %v900 = vadd.f32 %v898, %v899
        %v901 = vsel %vm707, %v842, 0.0
        %v902 = vadd.f32 %v900, %v901
        %v903 = vsel %vm707, %v843, 0.0
        %v904 = vadd.f32 %v902, %v903
        %v905 = vsel %vm707, %v844, 0.0
        %v906 = vadd.f32 %v904, %v905
        %v907 = vsel %vm707, %v845, 0.0
        %v908 = vadd.f32 %v906, %v907
        %v909 = vrot.slane %v908, 4
        %v910 = vadd.f32 %v908, %v909
        %v911 = vrot.slane %v910, 2
        %v912 = vadd.f32 %v910, %v911
        %v913 = vrot.slane %v912, 1
        %v914 = vadd.f32 %v912, %v913
        %v915 = vadd.f32 %v813, %v914
        %916 = vst.msk [vmem:[#allocation6] sm:$0x1] %vm811, %v915
        %s917 = smul.u32 32, %s21
        %p918 = scmp.lt.s32.totalorder %s917, 63
        %s919 = scalar_select %p918, %s917, 63
        %s920 = smul.addr %s919, 8
        %s921 = scalar_lea.vmem %s2, %s920
        // Predicated region
        $region37: #{tpu_custom_call.1} parent=27 // pred_check
          %p922 = pneg %p86
        $region38: #{tpu_custom_call.1} parent=27 // pred_check_branch
          %924 = sbr.rel (%p922) target = $region40
        $region39: #{tpu_custom_call.1} parent=27 // pred_region
          %s925 = smul.u32 32, %s21
        $region40: #{tpu_custom_call.1} parent=27 // pred_fallthru
          _
        // Predicated region
        $region41: #{tpu_custom_call.1} parent=27 // pred_check
          %p926 = pneg %p107
        $region42: #{tpu_custom_call.1} parent=27 // pred_check_branch
          %928 = sbr.rel (%p926) target = $region44
        $region43: #{tpu_custom_call.1} parent=27 // pred_region
          %s930 = ssub.s32 16, 16
          %931 = vsyncadd [#allocation4], %s930
          %s933 = sshll.u32 [#allocation5], 4
          %s934 = int_to_ptr.vmem [resolvable:$true] %s933
          %936 = dma.vmem_to_hbm [thread:$0]  %s934, 16, %s3, [#allocation4]
        $region44: #{tpu_custom_call.1} parent=27 // pred_fallthru
          _
        // Predicated region
        $region45: #{tpu_custom_call.1} parent=27 // pred_check
          %p937 = pneg %p128
        $region46: #{tpu_custom_call.1} parent=27 // pred_check_branch
          %939 = sbr.rel (%p937) target = $region48
        $region47: #{tpu_custom_call.1} parent=27 // pred_region
          %s941 = ssub.s32 16, 16
          %942 = vsyncadd [#allocation7], %s941
          %s944 = sshll.u32 [#allocation6], 4
          %s945 = int_to_ptr.vmem [resolvable:$true] %s944
          %947 = dma.vmem_to_hbm [thread:$0]  %s945, 16, %s4, [#allocation7]
        $region48: #{tpu_custom_call.1} parent=27 // pred_fallthru
          _
        // Predicated region
        $region49: #{tpu_custom_call.1} parent=27 // pred_check
          %p948 = pneg %p107
        $region50: #{tpu_custom_call.1} parent=27 // pred_check_branch
          %950 = sbr.rel (%p948) target = $region52
        $region51: #{tpu_custom_call.1} parent=27 // pred_region
          %951 = dma.done [#allocation4], 16
        $region52: #{tpu_custom_call.1} parent=27 // pred_fallthru
          _
        // Predicated region
        $region53: #{tpu_custom_call.1} parent=27 // pred_check
          %p952 = pneg %p128
        $region54: #{tpu_custom_call.1} parent=27 // pred_check_branch
          %954 = sbr.rel (%p952) target = $region56
        $region55: #{tpu_custom_call.1} parent=27 // pred_region
          %955 = dma.done [#allocation7], 16
        $region56: #{tpu_custom_call.1} parent=27 // pred_fallthru
          _
      $region28: #{tpu_custom_call.1} parent=5 // pred_fallthru
        _
      %p956 = scmp.le.s32.totalorder 2, %s16
      // Predicated region
      $region57: #{tpu_custom_call.1} parent=5 // pred_check
        %p957 = pneg %p956
      $region58: #{tpu_custom_call.1} parent=5 // pred_check_branch
        %959 = sbr.rel (%p957) target = $region60
      $region59: #{tpu_custom_call.1} parent=5 // pred_region
        %s960 = ssub.s32 %s16, 2
        // Predicated region
        $region61: #{tpu_custom_call.1} parent=59 // pred_check
          %p961 = pneg %p92
        $region62: #{tpu_custom_call.1} parent=59 // pred_check_branch
          %963 = sbr.rel (%p961) target = $region64
        $region63: #{tpu_custom_call.1} parent=59 // pred_region
          %s964 = smul.u32 32, %s22
          %p965 = scmp.lt.s32.totalorder %s964, 63
          %s966 = scalar_select %p965, %s964, 63
          %s967 = smul.addr %s966, 8
          %s968 = scalar_lea.vmem %s2, %s967
        $region64: #{tpu_custom_call.1} parent=59 // pred_fallthru
          _
      $region60: #{tpu_custom_call.1} parent=5 // pred_fallthru
        _
    $region6: #{tpu_custom_call.1} parent=1 // loop_footer
      %s20 = sadd.s32 1, %s16
    $region7: #{tpu_custom_call.1} parent=1 // loop_footer_branch
      %15 = sbr.rel target = $region3
    $region8: #{tpu_custom_call.1} parent=1 // loop_exit
      _
    %969 = vsyncpa [#allocation3], 1
    %s970 = scalar_lea.sflag [#allocation3], 1
    %971 = vsyncpa %s970, 1
    %972 = vsyncpa [#allocation4], 1
    %s973 = scalar_lea.sflag [#allocation4], 1
    %974 = vsyncpa %s973, 1
    %975 = vsyncpa [#allocation7], 1

</llo_original>
